<compile_context>
chip_gen: v6e
topology: v6e:2x2x1
jax: 0.10.0
libtpu: 0.0.40
codegen_flags: <defaults>
</compile_context>

<pallas_src>
import jax
import jax.numpy as jnp
from jax.experimental import pallas as pl
from jax.experimental.pallas import tpu as pltpu

PACK = 8        # rows packed per packed-row (matches the 8-sublane vreg granularity)
FEAT = 15       # input features
HID = 3         # hidden units
OUT = 1         # output units


def ann3_kernel(x_ref, w1_ref, b1_ref, w2_ref, b2_ref, o_ref):
    # x_ref : (TILE_R, 120)   8 packed batch rows of 15 features each (lane-dense)
    # w1_ref: (120, 24)       block-diag: 8 copies of W1^T  (15,3)
    # b1_ref: (1, 24)         8 copies of b1
    # w2_ref: (24, 8)         block-diag: 8 copies of W2^T  (3,1)
    # b2_ref: (1, 8)          8 copies of b2
    # o_ref : (TILE_R, 8)     column j of packed-row i = output of original row 8*i+j
    x = x_ref[...]

    # linear1 + ReLU (no transpose of the large operand; batch stays on sublanes).
    h = jnp.dot(x, w1_ref[...], preferred_element_type=jnp.float32) + b1_ref[...]
    h = jnp.maximum(h, 0.0)                      # (TILE_R, 24)

    # linear2 + sigmoid (exp runs on the EUP; compute is hidden under the x DMA).
    y = jnp.dot(h, w2_ref[...], preferred_element_type=jnp.float32) + b2_ref[...]
    o_ref[...] = (1.0 / (1.0 + jnp.exp(-y))).astype(o_ref.dtype)


def ann3_forward(x, w1, b1, w2, b2, *, max_tile_rows=4096):
    """x: (B, 15) f32.  w1: (3,15), b1: (3,), w2: (1,3), b2: (1,)  (torch layout)."""
    B, F = x.shape
    assert F == FEAT, "ANN_3 expects 15 input features"

    x = x.astype(jnp.float32)
    w1 = w1.astype(jnp.float32)
    b1 = b1.astype(jnp.float32)
    w2 = w2.astype(jnp.float32)
    b2 = b2.astype(jnp.float32)

    # Block-diagonal packed weights (tiny; built once in the wrapper).
    eye = jnp.eye(PACK, dtype=jnp.float32)
    w1_block = jnp.kron(eye, w1.T)                             # (120, 24)
    b1_block = jnp.tile(b1, PACK).reshape(1, PACK * HID)       # (1, 24)
    w2_block = jnp.kron(eye, w2.T)                             # (24, 8)
    b2_block = jnp.tile(b2, PACK).reshape(1, PACK * OUT)       # (1, 8)

    # --- choose the packed-row tile -------------------------------------------------
    pack_rows = (B + PACK - 1) // PACK
    if pack_rows <= 16:
        # Tiny workloads: a single tile (rounded up to 8 sublanes).
        tile_rows = max(8, ((pack_rows + 7) // 8) * 8)
    else:
        # At least 2 tiles so both TensorCores get work on v7x; cap per-tile rows so
        # double-buffered tiles stay well inside the scoped VMEM limit everywhere.
        half = (pack_rows + 1) // 2
        tile_rows = min(max_tile_rows, ((half + 7) // 8) * 8)

    padded_rows = ((pack_rows + tile_rows - 1) // tile_rows) * tile_rows
    padded_b = padded_rows * PACK
    if padded_b != B:
        x = jnp.pad(x, ((0, padded_b - B), (0, 0)))
    # Free, contiguous reshape: 8 consecutive rows of 15 features -> one 120-wide row.
    x_packed = x.reshape(padded_rows, PACK * FEAT)
    num_tiles = padded_rows // tile_rows

    const2d = lambda i: (0, 0)  # weights/biases resident in VMEM across grid steps

    out = pl.pallas_call(
        ann3_kernel,
        out_shape=jax.ShapeDtypeStruct((padded_rows, PACK), jnp.float32),
        grid=(num_tiles,),
        in_specs=[
            pl.BlockSpec((tile_rows, PACK * FEAT), lambda i: (i, 0)),  # streamed x tiles
            pl.BlockSpec((PACK * FEAT, PACK * HID), const2d),
            pl.BlockSpec((1, PACK * HID), const2d),
            pl.BlockSpec((PACK * HID, PACK * OUT), const2d),
            pl.BlockSpec((1, PACK * OUT), const2d),
        ],
        out_specs=pl.BlockSpec((tile_rows, PACK), lambda i: (i, 0)),
        compiler_params=pltpu.CompilerParams(
            dimension_semantics=("parallel",),
            vmem_limit_bytes=32 * 1024 * 1024,
        ),
    )(x_packed, w1_block, b1_block, w2_block, b2_block)

    # (padded_rows, 8) flattens in row order back to per-row outputs; drop padding.
    return out.reshape(padded_b, 1)[:B]


def reference_forward(x, w1, b1, w2, b2):
    """Pure-JAX reference mirroring the PyTorch forward exactly."""
    hp = jax.lax.Precision.HIGHEST
    h = jax.nn.relu(jnp.dot(x, w1.T, precision=hp) + b1)
    y = jnp.dot(h, w2.T, precision=hp) + b2
    return jax.nn.sigmoid(y)


if __name__ == "__main__":
    key = jax.random.PRNGKey(0)
    k_x, k_w1, k_b1, k_w2, k_b2, k_x2 = jax.random.split(key, 6)

    w1 = jax.random.normal(k_w1, (3, 15), dtype=jnp.float32) * 0.5
    b1 = jax.random.normal(k_b1, (3,), dtype=jnp.float32) * 0.5
    w2 = jax.random.normal(k_w2, (1, 3), dtype=jnp.float32) * 0.5
    b2 = jax.random.normal(k_b2, (1,), dtype=jnp.float32) * 0.5

    # Small primary test (batch = 8).
    B = 8
    x = jax.random.normal(k_x, (B, 15), dtype=jnp.float32)
    y = jax.block_until_ready(ann3_forward(x, w1, b1, w2, b2))
    y_ref = reference_forward(x, w1, b1, w2, b2)
    assert y.shape == (B, 1)
    assert jnp.allclose(y, y_ref, atol=1e-5, rtol=1e-5), "mismatch vs reference (B=8)"

    # Secondary test: batch not a multiple of the 8-row pack (exercises padding path).
    B2 = 13
    x2 = jax.random.normal(k_x2, (B2, 15), dtype=jnp.float32)
    y2 = jax.block_until_ready(ann3_forward(x2, w1, b1, w2, b2))
    y2_ref = reference_forward(x2, w1, b1, w2, b2)
    assert y2.shape == (B2, 1)
    assert jnp.allclose(y2, y2_ref, atol=1e-5, rtol=1e-5), "mismatch vs reference (B=13)"

    print("KERNEL_OK")
</pallas_src>

<mosaic_0001>
module attributes {stable_mosaic.version = 11 : i64} {
  func.func @ann3_kernel(%arg0: i32, %arg1: memref<8x120xf32, #tpu.memory_space<vmem>>, %arg2: memref<120x24xf32, #tpu.memory_space<vmem>>, %arg3: memref<1x24xf32, #tpu.memory_space<vmem>>, %arg4: memref<24x8xf32, #tpu.memory_space<vmem>>, %arg5: memref<1x8xf32, #tpu.memory_space<vmem>>, %arg6: memref<8x8xf32, #tpu.memory_space<vmem>>) attributes {dimension_semantics = [#tpu.dimension_semantics<parallel>], iteration_bounds = array<i64: 1>, scalar_prefetch = 0 : i64, scratch_operands = 0 : i64, tpu.core_type = #tpu.core_type<tc>, window_params = [{transform_indices = @transform_0, window_bounds = array<i64: 8, 120>}, {pipeline_mode = #tpu.pipeline_mode<synchronous>, transform_indices = @transform_1, window_bounds = array<i64: 120, 24>}, {pipeline_mode = #tpu.pipeline_mode<synchronous>, transform_indices = @transform_2, window_bounds = array<i64: 1, 24>}, {pipeline_mode = #tpu.pipeline_mode<synchronous>, transform_indices = @transform_3, window_bounds = array<i64: 24, 8>}, {pipeline_mode = #tpu.pipeline_mode<synchronous>, transform_indices = @transform_4, window_bounds = array<i64: 1, 8>}, {transform_indices = @transform_5, window_bounds = array<i64: 8, 8>}]} {
    %c0 = arith.constant 0 : index
    %c0_0 = arith.constant 0 : index
    %0 = vector.load %arg1[%c0, %c0_0] : memref<8x120xf32, #tpu.memory_space<vmem>>, vector<8x120xf32>
    %c0_1 = arith.constant 0 : index
    %c0_2 = arith.constant 0 : index
    %1 = vector.load %arg2[%c0_1, %c0_2] : memref<120x24xf32, #tpu.memory_space<vmem>>, vector<120x24xf32>
    %cst = arith.constant dense<0.000000e+00> : vector<8x24xf32>
    %2 = tpu.matmul %0, %1, %cst {dimension_numbers = #tpu.dot_dimension_numbers<[1], [0], [0], [1], [0, 0, 1, 1], [], []>} : vector<8x120xf32>, vector<120x24xf32>, vector<8x24xf32> -> vector<8x24xf32>
    %c0_3 = arith.constant 0 : index
    %c0_4 = arith.constant 0 : index
    %3 = vector.load %arg3[%c0_3, %c0_4] : memref<1x24xf32, #tpu.memory_space<vmem>>, vector<1x24xf32>
    %4 = vector.broadcast %3 : vector<1x24xf32> to vector<8x24xf32>
    %5 = arith.addf %2, %4 : vector<8x24xf32>
    %cst_5 = arith.constant 0.000000e+00 : f32
    %6 = vector.broadcast %cst_5 : f32 to vector<8x24xf32>
    %7 = arith.maximumf %5, %6 : vector<8x24xf32>
    %c0_6 = arith.constant 0 : index
    %c0_7 = arith.constant 0 : index
    %8 = vector.load %arg4[%c0_6, %c0_7] : memref<24x8xf32, #tpu.memory_space<vmem>>, vector<24x8xf32>
    %cst_8 = arith.constant dense<0.000000e+00> : vector<8x8xf32>
    %9 = tpu.matmul %7, %8, %cst_8 {dimension_numbers = #tpu.dot_dimension_numbers<[1], [0], [0], [1], [0, 0, 1, 1], [], []>} : vector<8x24xf32>, vector<24x8xf32>, vector<8x8xf32> -> vector<8x8xf32>
    %c0_9 = arith.constant 0 : index
    %c0_10 = arith.constant 0 : index
    %10 = vector.load %arg5[%c0_9, %c0_10] : memref<1x8xf32, #tpu.memory_space<vmem>>, vector<1x8xf32>
    %11 = vector.broadcast %10 : vector<1x8xf32> to vector<8x8xf32>
    %12 = arith.addf %9, %11 : vector<8x8xf32>
    %cst_11 = arith.constant 0.000000e+00 : f32
    %13 = vector.broadcast %cst_11 : f32 to vector<8x8xf32>
    %14 = arith.subf %13, %12 : vector<8x8xf32>
    %15 = math.exp %14 : vector<8x8xf32>
    %cst_12 = arith.constant 1.000000e+00 : f32
    %16 = vector.broadcast %cst_12 : f32 to vector<8x8xf32>
    %17 = arith.addf %16, %15 : vector<8x8xf32>
    %cst_13 = arith.constant 1.000000e+00 : f32
    %18 = vector.broadcast %cst_13 : f32 to vector<8x8xf32>
    %19 = arith.divf %18, %17 : vector<8x8xf32>
    %c0_14 = arith.constant 0 : index
    %c0_15 = arith.constant 0 : index
    %20 = vector.load %arg6[%c0_14, %c0_15] : memref<8x8xf32, #tpu.memory_space<vmem>>, vector<8x8xf32>
    tpu.vector_store %arg6[%c0_14, %c0_15], %19 {strides = array<i32>} : memref<8x8xf32, #tpu.memory_space<vmem>>, vector<8x8xf32>,
    return
  }
  func.func @transform_0(%arg0: i32) -> (i32, i32) {
    %c0_i32 = arith.constant 0 : i32
    %c0_i32_0 = arith.constant 0 : i32
    return %arg0, %c0_i32 : i32, i32
  }
  func.func @transform_1(%arg0: i32) -> (i32, i32) {
    %c0_i32 = arith.constant 0 : i32
    %c0_i32_0 = arith.constant 0 : i32
    %c0_i32_1 = arith.constant 0 : i32
    return %c0_i32, %c0_i32_0 : i32, i32
  }
  func.func @transform_2(%arg0: i32) -> (i32, i32) {
    %c0_i32 = arith.constant 0 : i32
    %c0_i32_0 = arith.constant 0 : i32
    %c0_i32_1 = arith.constant 0 : i32
    return %c0_i32, %c0_i32_0 : i32, i32
  }
  func.func @transform_3(%arg0: i32) -> (i32, i32) {
    %c0_i32 = arith.constant 0 : i32
    %c0_i32_0 = arith.constant 0 : i32
    %c0_i32_1 = arith.constant 0 : i32
    return %c0_i32, %c0_i32_0 : i32, i32
  }
  func.func @transform_4(%arg0: i32) -> (i32, i32) {
    %c0_i32 = arith.constant 0 : i32
    %c0_i32_0 = arith.constant 0 : i32
    %c0_i32_1 = arith.constant 0 : i32
    return %c0_i32, %c0_i32_0 : i32, i32
  }
  func.func @transform_5(%arg0: i32) -> (i32, i32) {
    %c0_i32 = arith.constant 0 : i32
    %c0_i32_0 = arith.constant 0 : i32
    return %arg0, %c0_i32 : i32, i32
  }
}

</mosaic_0001>

<llo_original>
// kernel: tpu_custom_call.1
$region0: #{tpu_custom_call.1}
  #allocation0 [shape = 'u32[]', space=smem, size = 0x4, offset = 0x4, fixed_abs, tag = 'smem constant byte address 0x4 - core index']
  #allocation1 [shape = 'u32[144,128]{1,0:T(1,128)}', space=vmem, size = 0x12000, scoped, tag = 'internal scratch']
  %s0 = inlined_call_operand.vmem [shape: f32[8,120], index: 0, kind: input, shape index: {}]
  %s1 = inlined_call_operand.vmem [shape: f32[120,24], index: 1, kind: input, shape index: {}]
  %s2 = inlined_call_operand.vmem [shape: f32[1,24], index: 2, kind: input, shape index: {}]
  %s3 = inlined_call_operand.vmem [shape: f32[24,8], index: 3, kind: input, shape index: {}]
  %s4 = inlined_call_operand.vmem [shape: f32[1,8], index: 4, kind: input, shape index: {}]
  %s5 = inlined_call_operand.hbm [shape: f32[8,8], index: 5, kind: output, shape index: {}]
  %s6 = sld [smem:[#allocation0]]
  $region30: #{tpu_custom_call.1} parent=0
    _
  %s8 = ssub.s32 1, %s6
  %s9 = scalar_select 0, %s8, %s6
  $region1: #{tpu_custom_call.1} parent=0
    #allocation2 [shape = 'u8[4096]{0}', space=vmem, size = 0x1000, scoped, tag = 'output window, operand 0, single buffered']
    #allocation3 [shape = 's32[1]{0}', space=sflag, size = 0x4, scoped, tag = 'scoped memory for tpu_custom_call.1']
    %10 = vsyncpa [#allocation3], 0
    // Predicated region
    $region2: #{tpu_custom_call.1} parent=1 // pred_check
      _
    $region3: #{tpu_custom_call.1} parent=1 // pred_check_branch
      %12 = sbr.rel (0) target = $region5
    $region4: #{tpu_custom_call.1} parent=1 // pred_region
      _
    $region5: #{tpu_custom_call.1} parent=1 // pred_fallthru
      _
    // Predicated region
    $region6: #{tpu_custom_call.1} parent=1 // pred_check
      _
    $region7: #{tpu_custom_call.1} parent=1 // pred_check_branch
      %14 = sbr.rel (0) target = $region9
    $region8: #{tpu_custom_call.1} parent=1 // pred_region
      _
    $region9: #{tpu_custom_call.1} parent=1 // pred_fallthru
      _
    // Predicated region
    $region10: #{tpu_custom_call.1} parent=1 // pred_check
      _
    $region11: #{tpu_custom_call.1} parent=1 // pred_check_branch
      %16 = sbr.rel (0) target = $region13
    $region12: #{tpu_custom_call.1} parent=1 // pred_region
      _
    $region13: #{tpu_custom_call.1} parent=1 // pred_fallthru
      _
    // Predicated region
    $region14: #{tpu_custom_call.1} parent=1 // pred_check
      _
    $region15: #{tpu_custom_call.1} parent=1 // pred_check_branch
      %18 = sbr.rel (0) target = $region17
    $region16: #{tpu_custom_call.1} parent=1 // pred_region
      _
    $region17: #{tpu_custom_call.1} parent=1 // pred_fallthru
      _
    // Predicated region
    $region18: #{tpu_custom_call.1} parent=1 // pred_check
      _
    $region19: #{tpu_custom_call.1} parent=1 // pred_check_branch
      %20 = sbr.rel (0) target = $region21
    $region20: #{tpu_custom_call.1} parent=1 // pred_region
      _
    $region21: #{tpu_custom_call.1} parent=1 // pred_fallthru
      _
    %v21 = vld [vmem:[%s0] sm:$0xff]
    %v22 = vld [vmem:[%s1] sm:$0xff]
    %v23 = vld [vmem:[%s1 + $0x8] sm:$0xff]
    %v24 = vld [vmem:[%s1 + $0x10] sm:$0xff]
    %v25 = vld [vmem:[%s1 + $0x18] sm:$0xff]
    %v26 = vld [vmem:[%s1 + $0x20] sm:$0xff]
    %v27 = vld [vmem:[%s1 + $0x28] sm:$0xff]
    %v28 = vld [vmem:[%s1 + $0x30] sm:$0xff]
    %v29 = vld [vmem:[%s1 + $0x38] sm:$0xff]
    %v30 = vld [vmem:[%s1 + $0x40] sm:$0xff]
    %v31 = vld [vmem:[%s1 + $0x48] sm:$0xff]
    %v32 = vld [vmem:[%s1 + $0x50] sm:$0xff]
    %v33 = vld [vmem:[%s1 + $0x58] sm:$0xff]
    %v34 = vld [vmem:[%s1 + $0x60] sm:$0xff]
    %v35 = vld [vmem:[%s1 + $0x68] sm:$0xff]
    %v36 = vld [vmem:[%s1 + $0x70] sm:$0xff]
    %v37 = vld [vmem:[%s2] sm:$0x1]
    %v39 = vlaneseq
    %v40 = vshrl.u32 %v39, 7
    %v41 = vsub.s32 0, %v40
    %v42 = vrot.slane %v37, %v41
    %vm44 = vcmask 982016
    %v46 = vsel %vm44, %v21, 0
    %48 = vmatprep.subr.mxu0 0.0
    %49 = vmatpush1.msra.mxu0 0.0
    %50 = vmatprep.subr.mxu0 0.0
    %51 = vmatpush1.msra.mxu0 %v36
    %52 = vmatprep.subr.mxu0 0.0
    %53 = vmatpush1.msra.mxu0 %v35
    %54 = vmatprep.subr.mxu0 0.0
    %55 = vmatpush1.msra.mxu0 %v34
    %56 = vmatprep.subr.mxu0 0.0
    %57 = vmatpush1.msra.mxu0 %v33
    %58 = vmatprep.subr.mxu0 0.0
    %59 = vmatpush1.msra.mxu0 %v32
    %60 = vmatprep.subr.mxu0 0.0
    %61 = vmatpush1.msra.mxu0 %v31
    %62 = vmatprep.subr.mxu0 0.0
    %63 = vmatpush1.msra.mxu0 %v30
    %64 = vmatprep.subr.mxu0 0.0
    %65 = vmatpush1.msra.mxu0 %v29
    %66 = vmatprep.subr.mxu0 0.0
    %67 = vmatpush1.msra.mxu0 %v28
    %68 = vmatprep.subr.mxu0 0.0
    %69 = vmatpush1.msra.mxu0 %v27
    %70 = vmatprep.subr.mxu0 0.0
    %71 = vmatpush1.msra.mxu0 %v26
    %72 = vmatprep.subr.mxu0 0.0
    %73 = vmatpush1.msra.mxu0 %v25
    %74 = vmatprep.subr.mxu0 0.0
    %75 = vmatpush1.msra.mxu0 %v24
    %76 = vmatprep.subr.mxu0 0.0
    %77 = vmatpush1.msra.mxu0 %v23
    %78 = vmatprep.subr.mxu0 0.0
    %79 = vmatpush1.msra.mxu0 %v22
    %80 = vmatprep.subr.mxu0 0.0
    %81 = vmatpush2.msra.mxu0 0.0
    %82 = vmatprep.subr.mxu0 0.0
    %83 = vmatpush2.msra.mxu0 0.0
    %84 = vmatprep.subr.mxu0 0.0
    %85 = vmatpush2.msra.mxu0 0.0
    %86 = vmatprep.subr.mxu0 0.0
    %87 = vmatpush2.msra.mxu0 0.0
    %88 = vmatprep.subr.mxu0 0.0
    %89 = vmatpush2.msra.mxu0 0.0
    %90 = vmatprep.subr.mxu0 0.0
    %91 = vmatpush2.msra.mxu0 0.0
    %92 = vmatprep.subr.mxu0 0.0
    %93 = vmatpush2.msra.mxu0 0.0
    %94 = vmatprep.subr.mxu0 0.0
    %95 = vmatpush2.msra.mxu0 0.0
    %96 = vmatprep.subr.mxu0 0.0
    %97 = vmatpush2.msra.mxu0 0.0
    %98 = vmatprep.subr.mxu0 0.0
    %99 = vmatpush2.msra.mxu0 0.0
    %100 = vmatprep.subr.mxu0 0.0
    %101 = vmatpush2.msra.mxu0 0.0
    %102 = vmatprep.subr.mxu0 0.0
    %103 = vmatpush2.msra.mxu0 0.0
    %104 = vmatprep.subr.mxu0 0.0
    %105 = vmatpush2.msra.mxu0 0.0
    %106 = vmatprep.subr.mxu0 0.0
    %107 = vmatpush2.msra.mxu0 0.0
    %108 = vmatprep.subr.mxu0 0.0
    %109 = vmatpush2.msra.mxu0 0.0
    %110 = vmatprep.subr.mxu0 0.0
    %111 = vmatpush2.msra.mxu0 0.0
    %112 = vmatprep.mubr.f32.mxu0 0.0
    %113 = vmatmul.mubr.f32.gmra.mxu0 %v46
    %v114 = vpop.f32.mrf.mxu0
    %v115 = vadd.f32 %v42, %v114
    %v116 = vpop.f32.mrf.mxu0
    %117 = vdwg.mxu0
    %v118 = vmax.f32 %v115, 0.0
    %v119 = vld [vmem:[%s3] sm:$0xff]
    %v120 = vld [vmem:[%s3 + $0x8] sm:$0xff]
    %v121 = vld [vmem:[%s3 + $0x10] sm:$0xff]
    %v122 = vld [vmem:[%s4] sm:$0x1]
    %v124 = vlaneseq
    %v125 = vshrl.u32 %v124, 7
    %v126 = vsub.s32 0, %v125
    %v127 = vrot.slane %v122, %v126
    %vm129 = vcmask 195584
    %v131 = vsel %vm129, %v118, 0
    %133 = vmatprep.subr.mxu0 0.0
    %134 = vmatpush1.msra.mxu0 0.0
    %135 = vmatprep.subr.mxu0 0.0
    %136 = vmatpush1.msra.mxu0 0.0
    %137 = vmatprep.subr.mxu0 0.0
    %138 = vmatpush1.msra.mxu0 0.0
    %139 = vmatprep.subr.mxu0 0.0
    %140 = vmatpush1.msra.mxu0 0.0
    %141 = vmatprep.subr.mxu0 0.0
    %142 = vmatpush1.msra.mxu0 0.0
    %143 = vmatprep.subr.mxu0 0.0
    %144 = vmatpush1.msra.mxu0 0.0
    %145 = vmatprep.subr.mxu0 0.0
    %146 = vmatpush1.msra.mxu0 0.0
    %147 = vmatprep.subr.mxu0 0.0
    %148 = vmatpush1.msra.mxu0 0.0
    %149 = vmatprep.subr.mxu0 0.0
    %150 = vmatpush1.msra.mxu0 0.0
    %151 = vmatprep.subr.mxu0 0.0
    %152 = vmatpush1.msra.mxu0 0.0
    %153 = vmatprep.subr.mxu0 0.0
    %154 = vmatpush1.msra.mxu0 0.0
    %155 = vmatprep.subr.mxu0 0.0
    %156 = vmatpush1.msra.mxu0 0.0
    %157 = vmatprep.subr.mxu0 0.0
    %158 = vmatpush1.msra.mxu0 0.0
    %159 = vmatprep.subr.mxu0 0.0
    %160 = vmatpush1.msra.mxu0 %v121
    %161 = vmatprep.subr.mxu0 0.0
    %162 = vmatpush1.msra.mxu0 %v120
    %163 = vmatprep.subr.mxu0 0.0
    %164 = vmatpush1.msra.mxu0 %v119
    %165 = vmatprep.subr.mxu0 0.0
    %166 = vmatpush2.msra.mxu0 0.0
    %167 = vmatprep.subr.mxu0 0.0
    %168 = vmatpush2.msra.mxu0 0.0
    %169 = vmatprep.subr.mxu0 0.0
    %170 = vmatpush2.msra.mxu0 0.0
    %171 = vmatprep.subr.mxu0 0.0
    %172 = vmatpush2.msra.mxu0 0.0
    %173 = vmatprep.subr.mxu0 0.0
    %174 = vmatpush2.msra.mxu0 0.0
    %175 = vmatprep.subr.mxu0 0.0
    %176 = vmatpush2.msra.mxu0 0.0
    %177 = vmatprep.subr.mxu0 0.0
    %178 = vmatpush2.msra.mxu0 0.0
    %179 = vmatprep.subr.mxu0 0.0
    %180 = vmatpush2.msra.mxu0 0.0
    %181 = vmatprep.subr.mxu0 0.0
    %182 = vmatpush2.msra.mxu0 0.0
    %183 = vmatprep.subr.mxu0 0.0
    %184 = vmatpush2.msra.mxu0 0.0
    %185 = vmatprep.subr.mxu0 0.0
    %186 = vmatpush2.msra.mxu0 0.0
    %187 = vmatprep.subr.mxu0 0.0
    %188 = vmatpush2.msra.mxu0 0.0
    %189 = vmatprep.subr.mxu0 0.0
    %190 = vmatpush2.msra.mxu0 0.0
    %191 = vmatprep.subr.mxu0 0.0
    %192 = vmatpush2.msra.mxu0 0.0
    %193 = vmatprep.subr.mxu0 0.0
    %194 = vmatpush2.msra.mxu0 0.0
    %195 = vmatprep.subr.mxu0 0.0
    %196 = vmatpush2.msra.mxu0 0.0
    %197 = vmatprep.mubr.f32.mxu0 0.0
    %198 = vmatmul.mubr.f32.gmra.mxu0 %v131
    %v199 = vpop.f32.mrf.mxu0
    %v200 = vadd.f32 %v127, %v199
    %v201 = vpop.f32.mrf.mxu0
    %202 = vdwg.mxu0
    %v203 = vsub.f32 0.0, %v200
    %v204 = vmul.f32 %v203, 1.442695
    %v205 = vpow.pop %v204
    %v206 = vadd.f32 %v205, 1.0
    %v207 = vrcp.pop %v206
    %v208 = vmul.f32 1.0, %v207
    %vm209 = vcmask 64512
    %210 = vst.msk [vmem:[#allocation2] sm:$0xff] %vm209, %v208
    // Predicated region
    $region22: #{tpu_custom_call.1} parent=1 // pred_check
      _
    $region23: #{tpu_custom_call.1} parent=1 // pred_check_branch
      %212 = sbr.rel (0) target = $region25
    $region24: #{tpu_custom_call.1} parent=1 // pred_region
      %s214 = ssub.s32 128, 128
      %215 = vsyncadd [#allocation3], %s214
      %s217 = sshll.u32 [#allocation2], 4
      %s218 = int_to_ptr.vmem [resolvable:$true] %s217
      %220 = dma.vmem_to_hbm [thread:$0]  %s218, 128, %s5, [#allocation3]
    $region25: #{tpu_custom_call.1} parent=1 // pred_fallthru
      _
    // Predicated region
    $region26: #{tpu_custom_call.1} parent=1 // pred_check
      _
    $region27: #{tpu_custom_call.1} parent=1 // pred_check_branch
      %222 = sbr.rel (0) target = $region29
    $region28: #{tpu_custom_call.1} parent=1 // pred_region
      %223 = dma.done [#allocation3], 128
    $region29: #{tpu_custom_call.1} parent=1 // pred_fallthru
      _
    %224 = vsyncpa [#allocation3], 1

</llo_original>
